<compile_context>
chip_gen: v5e
topology: v5e:2x2
jax: 0.10.0
libtpu: 0.0.40
codegen_flags: <defaults>
</compile_context>

<pallas_src>
import functools

import jax
import jax.numpy as jnp
from jax.experimental import pallas as pl
from jax.experimental.pallas import tpu as pltpu


_PACK = 32  # x values packed per output row: 32 * 12 grid points = 384 lanes (3*128)


def _rbf_packed_kernel(x_ref, out_ref, *, lo, step, neg_inv_two_var, num_points, pack):
    # x_ref:   (TR, pack)              input dtype
    # out_ref: (TR, pack * num_points) out dtype   (lane-dense: 384 = 3*128 lanes)
    width = pack * num_points
    x = x_ref[...].astype(jnp.float32)                                  # (TR, P)

    # Selection matrix S[c, j] = 1.0 iff j // G == c  ->  x_rep[r, j] = x[r, j // G].
    c_idx = jax.lax.broadcasted_iota(jnp.int32, (pack, width), 0)
    j_idx = jax.lax.broadcasted_iota(jnp.int32, (pack, width), 1)
    lower = c_idx * num_points
    sel = ((j_idx >= lower) & (j_idx < lower + num_points)).astype(jnp.bfloat16)

    # Exact f32 lane-repeat via 3x bf16 MXU passes (MXU is idle in this
    # mem-bound kernel, so the repeat is effectively free slot-wise).
    x_hi = x.astype(jnp.bfloat16)
    r1 = x - x_hi.astype(jnp.float32)
    x_mid = r1.astype(jnp.bfloat16)
    r2 = r1 - x_mid.astype(jnp.float32)
    x_lo = r2.astype(jnp.bfloat16)
    x_rep = (jnp.dot(x_hi, sel, preferred_element_type=jnp.float32)
             + jnp.dot(x_mid, sel, preferred_element_type=jnp.float32)
             + jnp.dot(x_lo, sel, preferred_element_type=jnp.float32))   # (TR, P*G)

    # Grid points repeated with period G along lanes: grid_rep[j] = lo + step*(j % G).
    j_row = jax.lax.broadcasted_iota(jnp.int32, (1, width), 1)
    grid_rep = lo + step * (j_row % num_points).astype(jnp.float32)      # (1, P*G)

    diff = x_rep - grid_rep
    out_ref[...] = jnp.exp((diff * diff) * neg_inv_two_var).astype(out_ref.dtype)


def _rbf_narrow_kernel(x_ref, out_ref, *, lo, step, neg_inv_two_var, num_points):
    # Fallback path (N % _PACK != 0): (TN, 1) -> (TN, G); narrow masked stores.
    x = x_ref[...].astype(jnp.float32)                                   # (TN, 1)
    idx = jax.lax.broadcasted_iota(jnp.int32, (1, num_points), 1)
    grid = lo + step * idx.astype(jnp.float32)                           # (1, G)
    diff = x - grid
    out_ref[...] = jnp.exp((diff * diff) * neg_inv_two_var).astype(out_ref.dtype)


def radial_basis_function(
    x: jax.Array,
    grid_min: float = -2.0,
    grid_max: float = 2.0,
    num_grids: int = 5,
    omega: float = 1.0,
    extra: int = 3,
    tile_rows: int = 2048,
    out_dtype=jnp.float32,
) -> jax.Array:
    h = (grid_max - grid_min) / num_grids
    var = float(omega) ** 2
    num_points = num_grids + 2 * extra + 1
    lo = grid_min - extra * h
    hi = grid_max + extra * h
    step = (hi - lo) / (num_points - 1) if num_points > 1 else 0.0
    neg_inv_two_var = -1.0 / (2.0 * var)

    orig_shape = x.shape
    out_dtype = jnp.dtype(out_dtype)
    n = int(x.size)

    common = dict(
        lo=float(lo),
        step=float(step),
        neg_inv_two_var=float(neg_inv_two_var),
        num_points=num_points,
    )
    cost = pl.CostEstimate(
        flops=5 * num_points * n,
        transcendentals=num_points * n,
        bytes_accessed=n * x.dtype.itemsize + n * num_points * out_dtype.itemsize,
    )

    if n >= _PACK and n % _PACK == 0:
        # ---- lane-dense packed path: (N, G) viewed as (N/32, 32*G) ----
        n_rows = n // _PACK
        width = _PACK * num_points
        x2 = x.reshape(n_rows, _PACK)          # free: row-major contiguous view

        tile_r = max(8, (int(tile_rows) // 8) * 8)
        if n_rows <= tile_r:
            tile_r = n_rows                    # single (possibly ragged) block

        kernel = functools.partial(_rbf_packed_kernel, pack=_PACK, **common)
        out = pl.pallas_call(
            kernel,
            out_shape=jax.ShapeDtypeStruct((n_rows, width), out_dtype),
            grid_spec=pltpu.PrefetchScalarGridSpec(
                num_scalar_prefetch=0,
                grid=(pl.cdiv(n_rows, tile_r),),
                in_specs=[pl.BlockSpec((tile_r, _PACK), lambda i: (i, 0))],
                out_specs=pl.BlockSpec((tile_r, width), lambda i: (i, 0)),
            ),
            compiler_params=pltpu.CompilerParams(
                dimension_semantics=("parallel",),
                vmem_limit_bytes=32 * 1024 * 1024,
            ),
            cost_estimate=cost,
        )(x2)
        return out.reshape(*orig_shape, num_points)

    # ---- fallback narrow path (N not a multiple of 32) ----
    x_flat = x.reshape(-1, 1)
    tile = max(8, (8 * int(tile_rows) // 8) * 8)
    tile = min(tile, ((n + 7) // 8) * 8)
    kernel = functools.partial(_rbf_narrow_kernel, **common)
    out = pl.pallas_call(
        kernel,
        out_shape=jax.ShapeDtypeStruct((n, num_points), out_dtype),
        grid_spec=pltpu.PrefetchScalarGridSpec(
            num_scalar_prefetch=0,
            grid=(pl.cdiv(n, tile),),
            in_specs=[pl.BlockSpec((tile, 1), lambda i: (i, 0))],
            out_specs=pl.BlockSpec((tile, num_points), lambda i: (i, 0)),
        ),
        compiler_params=pltpu.CompilerParams(
            dimension_semantics=("parallel",),
            vmem_limit_bytes=32 * 1024 * 1024,
        ),
        cost_estimate=cost,
    )(x_flat)
    return out.reshape(*orig_shape, num_points)


def _reference(x, grid_min=-2.0, grid_max=2.0, num_grids=5, omega=1.0, extra=3):
    h = (grid_max - grid_min) / num_grids
    var = omega ** 2
    grid = jnp.linspace(
        grid_min - extra * h, grid_max + extra * h, num_grids + 2 * extra + 1,
        dtype=jnp.float32,
    )
    return jnp.exp(-((x[..., None] - grid) ** 2) / (2 * var))


if __name__ == "__main__":
    key = jax.random.PRNGKey(0)
    # Small input consistent with an NCHW activation map: (batch=2, C=4, H=16, W=16).
    x = jax.random.normal(key, (2, 4, 16, 16), dtype=jnp.float32) * 2.5

    y = jax.block_until_ready(radial_basis_function(x))
    y_ref = _reference(x)
    assert y.shape == (2, 4, 16, 16, 12), y.shape
    assert jnp.allclose(y, y_ref, atol=1e-5, rtol=1e-5), float(
        jnp.max(jnp.abs(y - y_ref))
    )

    # Also exercise the narrow fallback path (element count not divisible by 32).
    x2 = jax.random.normal(jax.random.PRNGKey(1), (3, 7, 5), dtype=jnp.float32) * 2.5
    y2 = jax.block_until_ready(radial_basis_function(x2))
    assert y2.shape == (3, 7, 5, 12), y2.shape
    assert jnp.allclose(y2, _reference(x2), atol=1e-5, rtol=1e-5), float(
        jnp.max(jnp.abs(y2 - _reference(x2)))
    )

    print("KERNEL_OK")
</pallas_src>

<mosaic_0001>
module attributes {stable_mosaic.version = 11 : i64} {
  func.func @_rbf_packed_kernel(%arg0: i32, %arg1: memref<64x32xf32, #tpu.memory_space<vmem>>, %arg2: memref<64x384xf32, #tpu.memory_space<vmem>>) attributes {dimension_semantics = [#tpu.dimension_semantics<parallel>], iteration_bounds = array<i64: 1>, scalar_prefetch = 0 : i64, scratch_operands = 0 : i64, tpu.core_type = #tpu.core_type<tc>, window_params = [{transform_indices = @transform_0, window_bounds = array<i64: 64, 32>}, {transform_indices = @transform_1, window_bounds = array<i64: 64, 384>}]} {
    %c0 = arith.constant 0 : index
    %c0_0 = arith.constant 0 : index
    %0 = vector.load %arg1[%c0, %c0_0] : memref<64x32xf32, #tpu.memory_space<vmem>>, vector<64x32xf32>
    %1 = tpu.iota {dimensions = array<i32: 0>} : vector<32x384xi32>
    %2 = tpu.iota {dimensions = array<i32: 1>} : vector<32x384xi32>
    %c12_i32 = arith.constant 12 : i32
    %3 = vector.broadcast %c12_i32 : i32 to vector<32x384xi32>
    %4 = arith.muli %1, %3 : vector<32x384xi32>
    %5 = arith.cmpi sge, %2, %4 : vector<32x384xi32>
    %c12_i32_1 = arith.constant 12 : i32
    %6 = vector.broadcast %c12_i32_1 : i32 to vector<32x384xi32>
    %7 = arith.addi %4, %6 : vector<32x384xi32>
    %8 = arith.cmpi slt, %2, %7 : vector<32x384xi32>
    %9 = arith.andi %5, %8 : vector<32x384xi1>
    %10 = arith.extui %9 : vector<32x384xi1> to vector<32x384xi32>
    %11 = arith.sitofp %10 : vector<32x384xi32> to vector<32x384xf32>
    %12 = arith.truncf %11 : vector<32x384xf32> to vector<32x384xbf16>
    %13 = arith.truncf %0 : vector<64x32xf32> to vector<64x32xbf16>
    %14 = arith.extf %13 : vector<64x32xbf16> to vector<64x32xf32>
    %15 = arith.subf %0, %14 : vector<64x32xf32>
    %16 = arith.truncf %15 : vector<64x32xf32> to vector<64x32xbf16>
    %17 = arith.extf %16 : vector<64x32xbf16> to vector<64x32xf32>
    %18 = arith.subf %15, %17 : vector<64x32xf32>
    %19 = arith.truncf %18 : vector<64x32xf32> to vector<64x32xbf16>
    %cst = arith.constant dense<0.000000e+00> : vector<64x384xf32>
    %20 = tpu.matmul %13, %12, %cst {dimension_numbers = #tpu.dot_dimension_numbers<[1], [0], [0], [1], [0, 0, 1, 1], [], []>} : vector<64x32xbf16>, vector<32x384xbf16>, vector<64x384xf32> -> vector<64x384xf32>
    %cst_2 = arith.constant dense<0.000000e+00> : vector<64x384xf32>
    %21 = tpu.matmul %16, %12, %cst_2 {dimension_numbers = #tpu.dot_dimension_numbers<[1], [0], [0], [1], [0, 0, 1, 1], [], []>} : vector<64x32xbf16>, vector<32x384xbf16>, vector<64x384xf32> -> vector<64x384xf32>
    %22 = arith.addf %20, %21 : vector<64x384xf32>
    %cst_3 = arith.constant dense<0.000000e+00> : vector<64x384xf32>
    %23 = tpu.matmul %19, %12, %cst_3 {dimension_numbers = #tpu.dot_dimension_numbers<[1], [0], [0], [1], [0, 0, 1, 1], [], []>} : vector<64x32xbf16>, vector<32x384xbf16>, vector<64x384xf32> -> vector<64x384xf32>
    %24 = arith.addf %22, %23 : vector<64x384xf32>
    %25 = tpu.iota {dimensions = array<i32: 1>} : vector<1x384xi32>
    %c12_i32_4 = arith.constant 12 : i32
    %c0_i32 = arith.constant 0 : i32
    %26 = arith.cmpi eq, %c12_i32_4, %c0_i32 : i32
    %c1_i32 = arith.constant 1 : i32
    %27 = arith.select %26, %c1_i32, %c12_i32_4 : i32
    %28 = vector.broadcast %27 : i32 to vector<1x384xi32>
    %29 = arith.remsi %25, %28 : vector<1x384xi32>
    %c0_i32_5 = arith.constant 0 : i32
    %30 = vector.broadcast %c0_i32_5 : i32 to vector<1x384xi32>
    %31 = arith.cmpi ne, %29, %30 : vector<1x384xi32>
    %c0_i32_6 = arith.constant 0 : i32
    %32 = vector.broadcast %c0_i32_6 : i32 to vector<1x384xi32>
    %33 = arith.cmpi slt, %29, %32 : vector<1x384xi32>
    %c0_i32_7 = arith.constant 0 : i32
    %34 = arith.cmpi slt, %27, %c0_i32_7 : i32
    %35 = vector.broadcast %34 : i1 to vector<1x384xi1>
    %36 = vector.broadcast %35 : vector<1x384xi1> to vector<1x384xi1>
    %37 = arith.xori %33, %36 : vector<1x384xi1>
    %38 = arith.andi %37, %31 : vector<1x384xi1>
    %39 = vector.broadcast %27 : i32 to vector<1x384xi32>
    %40 = arith.addi %29, %39 : vector<1x384xi32>
    %41 = arith.select %38, %40, %29 : vector<1x384xi1>, vector<1x384xi32>
    %42 = arith.sitofp %41 : vector<1x384xi32> to vector<1x384xf32>
    %cst_8 = arith.constant 8.000000e-01 : f32
    %43 = vector.broadcast %cst_8 : f32 to vector<1x384xf32>
    %44 = arith.mulf %43, %42 : vector<1x384xf32>
    %cst_9 = arith.constant -4.400000e+00 : f32
    %45 = vector.broadcast %cst_9 : f32 to vector<1x384xf32>
    %46 = arith.addf %45, %44 : vector<1x384xf32>
    %47 = vector.broadcast %46 : vector<1x384xf32> to vector<64x384xf32>
    %48 = arith.subf %24, %47 : vector<64x384xf32>
    %49 = arith.mulf %48, %48 : vector<64x384xf32>
    %cst_10 = arith.constant -5.000000e-01 : f32
    %50 = vector.broadcast %cst_10 : f32 to vector<64x384xf32>
    %51 = arith.mulf %49, %50 : vector<64x384xf32>
    %52 = math.exp %51 : vector<64x384xf32>
    %c0_11 = arith.constant 0 : index
    %c0_12 = arith.constant 0 : index
    %53 = vector.load %arg2[%c0_11, %c0_12] : memref<64x384xf32, #tpu.memory_space<vmem>>, vector<64x384xf32>
    tpu.vector_store %arg2[%c0_11, %c0_12], %52 {strides = array<i32>} : memref<64x384xf32, #tpu.memory_space<vmem>>, vector<64x384xf32>,
    return
  }
  func.func @transform_0(%arg0: i32) -> (i32, i32) {
    %c0_i32 = arith.constant 0 : i32
    %c0_i32_0 = arith.constant 0 : i32
    return %arg0, %c0_i32 : i32, i32
  }
  func.func @transform_1(%arg0: i32) -> (i32, i32) {
    %c0_i32 = arith.constant 0 : i32
    %c0_i32_0 = arith.constant 0 : i32
    return %arg0, %c0_i32 : i32, i32
  }
}

</mosaic_0001>

<llo_original>
// kernel: tpu_custom_call.1
$region0: #{tpu_custom_call.1}
  #allocation0 [shape = 'u32[]', space=smem, size = 0x4, offset = 0x4, fixed_abs, tag = 'smem constant byte address 0x4 - core index']
  #allocation1 [shape = 'u32[72,128]{1,0:T(1,128)}', space=vmem, size = 0x9000, scoped, tag = 'internal scratch']
  %s0 = inlined_call_operand.vmem [shape: f32[64,32], index: 0, kind: input, shape index: {}]
  %s1 = inlined_call_operand.hbm [shape: f32[64,384], index: 1, kind: output, shape index: {}]
  %s2 = sld [smem:[#allocation0]]
  $region14: #{tpu_custom_call.1} parent=0
    _
  %s4 = ssub.s32 1, %s2
  %s5 = scalar_select 0, %s4, %s2
  $region1: #{tpu_custom_call.1} parent=0
    #allocation2 [shape = 'u8[98304]{0}', space=vmem, size = 0x18000, scoped, tag = 'output window, operand 0, single buffered']
    #allocation3 [shape = 's32[1]{0}', space=sflag, size = 0x4, scoped, tag = 'scoped memory for tpu_custom_call.1']
    %6 = vsyncpa [#allocation3], 0
    // Predicated region
    $region2: #{tpu_custom_call.1} parent=1 // pred_check
      _
    $region3: #{tpu_custom_call.1} parent=1 // pred_check_branch
      %8 = sbr.rel (0) target = $region5
    $region4: #{tpu_custom_call.1} parent=1 // pred_region
      _
    $region5: #{tpu_custom_call.1} parent=1 // pred_fallthru
      _
    %v10 = vld [vmem:[%s0] sm:$0xff]
    %v11 = vld [vmem:[%s0 + $0x8] sm:$0xff]
    %v12 = vld [vmem:[%s0 + $0x10] sm:$0xff]
    %v13 = vld [vmem:[%s0 + $0x18] sm:$0xff]
    %v14 = vld [vmem:[%s0 + $0x20] sm:$0xff]
    %v15 = vld [vmem:[%s0 + $0x28] sm:$0xff]
    %v16 = vld [vmem:[%s0 + $0x30] sm:$0xff]
    %v17 = vld [vmem:[%s0 + $0x38] sm:$0xff]
    %v18 = vlaneseq
    %v19 = vshrl.u32 %v18, 7
    %v20 = vadd.s32 %v19, 8
    %v21 = vadd.s32 %v19, 16
    %v22 = vadd.s32 %v19, 24
    %v23 = vlaneseq
    %v24 = vand.u32 %v23, 127
    %v25 = vadd.s32 %v24, 128
    %v26 = vadd.s32 %v24, 256
    %v27 = vmul.u32 %v19, 12
    %v28 = vmul.u32 %v20, 12
    %v29 = vmul.u32 %v21, 12
    %v30 = vmul.u32 %v22, 12
    %vm31 = vcmp.ge.s32.totalorder %v24, %v27
    %vm32 = vcmp.ge.s32.totalorder %v25, %v27
    %vm33 = vcmp.ge.s32.totalorder %v26, %v27
    %vm34 = vcmp.ge.s32.totalorder %v24, %v28
    %vm35 = vcmp.ge.s32.totalorder %v25, %v28
    %vm36 = vcmp.ge.s32.totalorder %v26, %v28
    %vm37 = vcmp.ge.s32.totalorder %v24, %v29
    %vm38 = vcmp.ge.s32.totalorder %v25, %v29
    %vm39 = vcmp.ge.s32.totalorder %v26, %v29
    %vm40 = vcmp.ge.s32.totalorder %v24, %v30
    %vm41 = vcmp.ge.s32.totalorder %v25, %v30
    %vm42 = vcmp.ge.s32.totalorder %v26, %v30
    %v43 = vadd.s32 %v27, 12
    %v44 = vadd.s32 %v28, 12
    %v45 = vadd.s32 %v29, 12
    %v46 = vadd.s32 %v30, 12
    %vm47 = vcmp.lt.s32.totalorder %v24, %v43
    %vm48 = vcmp.lt.s32.totalorder %v25, %v43
    %vm49 = vcmp.lt.s32.totalorder %v26, %v43
    %vm50 = vcmp.lt.s32.totalorder %v24, %v44
    %vm51 = vcmp.lt.s32.totalorder %v25, %v44
    %vm52 = vcmp.lt.s32.totalorder %v26, %v44
    %vm53 = vcmp.lt.s32.totalorder %v24, %v45
    %vm54 = vcmp.lt.s32.totalorder %v25, %v45
    %vm55 = vcmp.lt.s32.totalorder %v26, %v45
    %vm56 = vcmp.lt.s32.totalorder %v24, %v46
    %vm57 = vcmp.lt.s32.totalorder %v25, %v46
    %vm58 = vcmp.lt.s32.totalorder %v26, %v46
    %vm59 = vmand %vm31, %vm47
    %vm60 = vmand %vm32, %vm48
    %vm61 = vmand %vm33, %vm49
    %vm62 = vmand %vm34, %vm50
    %vm63 = vmand %vm35, %vm51
    %vm64 = vmand %vm36, %vm52
    %vm65 = vmand %vm37, %vm53
    %vm66 = vmand %vm38, %vm54
    %vm67 = vmand %vm39, %vm55
    %vm68 = vmand %vm40, %vm56
    %vm69 = vmand %vm41, %vm57
    %vm70 = vmand %vm42, %vm58
    %v71 = vsel %vm59, 1, 0
    %v72 = vsel %vm60, 1, 0
    %v73 = vsel %vm61, 1, 0
    %v74 = vsel %vm62, 1, 0
    %v75 = vsel %vm63, 1, 0
    %v76 = vsel %vm64, 1, 0
    %v77 = vsel %vm65, 1, 0
    %v78 = vsel %vm66, 1, 0
    %v79 = vsel %vm67, 1, 0
    %v80 = vsel %vm68, 1, 0
    %v81 = vsel %vm69, 1, 0
    %v82 = vsel %vm70, 1, 0
    %v83 = vcvt.s32.f32 %v71
    %v84 = vcvt.s32.f32 %v72
    %v85 = vcvt.s32.f32 %v73
    %v86 = vcvt.s32.f32 %v74
    %v87 = vcvt.s32.f32 %v75
    %v88 = vcvt.s32.f32 %v76
    %v89 = vcvt.s32.f32 %v77
    %v90 = vcvt.s32.f32 %v78
    %v91 = vcvt.s32.f32 %v79
    %v92 = vcvt.s32.f32 %v80
    %v93 = vcvt.s32.f32 %v81
    %v94 = vcvt.s32.f32 %v82
    %v95 = vpack.c.bf16 %v86, %v83
    %v96 = vpack.c.bf16 %v87, %v84
    %v97 = vpack.c.bf16 %v88, %v85
    %v98 = vpack.c.bf16 %v92, %v89
    %v99 = vpack.c.bf16 %v93, %v90
    %v100 = vpack.c.bf16 %v94, %v91
    %v101 = vpack.c.bf16 %v10, %v10
    %v102 = vpack.c.bf16 %v11, %v11
    %v103 = vpack.c.bf16 %v12, %v12
    %v104 = vpack.c.bf16 %v13, %v13
    %v105 = vpack.c.bf16 %v14, %v14
    %v106 = vpack.c.bf16 %v15, %v15
    %v107 = vpack.c.bf16 %v16, %v16
    %v108 = vpack.c.bf16 %v17, %v17
    %v109 = vunpack.c.l.bf16 %v101
    %v110 = vunpack.c.l.bf16 %v102
    %v111 = vunpack.c.l.bf16 %v103
    %v112 = vunpack.c.l.bf16 %v104
    %v113 = vunpack.c.l.bf16 %v105
    %v114 = vunpack.c.l.bf16 %v106
    %v115 = vunpack.c.l.bf16 %v107
    %v116 = vunpack.c.l.bf16 %v108
    %v117 = vsub.f32 %v10, %v109
    %v118 = vsub.f32 %v11, %v110
    %v119 = vsub.f32 %v12, %v111
    %v120 = vsub.f32 %v13, %v112
    %v121 = vsub.f32 %v14, %v113
    %v122 = vsub.f32 %v15, %v114
    %v123 = vsub.f32 %v16, %v115
    %v124 = vsub.f32 %v17, %v116
    %v125 = vpack.c.bf16 %v117, %v117
    %v126 = vpack.c.bf16 %v118, %v118
    %v127 = vpack.c.bf16 %v119, %v119
    %v128 = vpack.c.bf16 %v120, %v120
    %v129 = vpack.c.bf16 %v121, %v121
    %v130 = vpack.c.bf16 %v122, %v122
    %v131 = vpack.c.bf16 %v123, %v123
    %v132 = vpack.c.bf16 %v124, %v124
    %v133 = vunpack.c.l.bf16 %v125
    %v134 = vunpack.c.l.bf16 %v126
    %v135 = vunpack.c.l.bf16 %v127
    %v136 = vunpack.c.l.bf16 %v128
    %v137 = vunpack.c.l.bf16 %v129
    %v138 = vunpack.c.l.bf16 %v130
    %v139 = vunpack.c.l.bf16 %v131
    %v140 = vunpack.c.l.bf16 %v132
    %v141 = vsub.f32 %v117, %v133
    %v142 = vsub.f32 %v118, %v134
    %v143 = vsub.f32 %v119, %v135
    %v144 = vsub.f32 %v120, %v136
    %v145 = vsub.f32 %v121, %v137
    %v146 = vsub.f32 %v122, %v138
    %v147 = vsub.f32 %v123, %v139
    %v148 = vsub.f32 %v124, %v140
    %v149 = vpack.c.bf16 %v142, %v141
    %v150 = vpack.c.bf16 %v144, %v143
    %v151 = vpack.c.bf16 %v146, %v145
    %v152 = vpack.c.bf16 %v148, %v147
    %v161 = vunpack.c.l.b16 %v125
    %v162 = vunpack.c.l.b16 %v126
    %v163 = vunpack.c.l.b16 %v127
    %v164 = vunpack.c.l.b16 %v128
    %v165 = vunpack.c.l.b16 %v129
    %v166 = vunpack.c.l.b16 %v130
    %v167 = vunpack.c.l.b16 %v131
    %v168 = vunpack.c.l.b16 %v132
    %v169 = vpack.c.b16 %v162, %v161
    %v170 = vpack.c.b16 %v164, %v163
    %v171 = vpack.c.b16 %v166, %v165
    %v172 = vpack.c.b16 %v168, %v167
    %vm173 = vcmask 261120
    %v175 = vsel %vm173, %v169, 0
    %v178 = vsel %vm173, %v170, 0
    %v181 = vsel %vm173, %v171, 0
    %v184 = vsel %vm173, %v172, 0
    %186 = vmatpush.bf16.msra.mxu0 0
    %187 = vmatpush.bf16.msra.mxu0 0
    %188 = vmatpush.bf16.msra.mxu0 0
    %189 = vmatpush.bf16.msra.mxu0 0
    %190 = vmatpush.bf16.msra.mxu0 0
    %191 = vmatpush.bf16.msra.mxu0 0
    %192 = vmatpush.bf16.msra.mxu0 %v98
    %193 = vmatpush.bf16.msra.mxu0 %v95
    %194 = vmatmul.bf16.gmra.mxu0 %v175
    %v195 = vpop.f32.mrf.mxu0
    %v196 = vadd.f32 0.0, %v195
    %v197 = vpop.f32.mrf.mxu0
    %v198 = vadd.f32 0.0, %v197
    %199 = vmatmul.bf16.gmra.mxu0 %v178
    %v200 = vpop.f32.mrf.mxu0
    %v201 = vadd.f32 0.0, %v200
    %v202 = vpop.f32.mrf.mxu0
    %v203 = vadd.f32 0.0, %v202
    %204 = vmatmul.bf16.gmra.mxu0 %v181
    %v205 = vpop.f32.mrf.mxu0
    %v206 = vadd.f32 0.0, %v205
    %v207 = vpop.f32.mrf.mxu0
    %v208 = vadd.f32 0.0, %v207
    %209 = vmatmul.bf16.gmra.mxu0 %v184
    %v210 = vpop.f32.mrf.mxu0
    %v211 = vadd.f32 0.0, %v210
    %v212 = vpop.f32.mrf.mxu0
    %v213 = vadd.f32 0.0, %v212
    %214 = vdwg.mxu0
    %215 = vmatpush.bf16.msra.mxu0 0
    %216 = vmatpush.bf16.msra.mxu0 0
    %217 = vmatpush.bf16.msra.mxu0 0
    %218 = vmatpush.bf16.msra.mxu0 0
    %219 = vmatpush.bf16.msra.mxu0 0
    %220 = vmatpush.bf16.msra.mxu0 0
    %221 = vmatpush.bf16.msra.mxu0 %v99
    %222 = vmatpush.bf16.msra.mxu0 %v96
    %223 = vmatmul.bf16.gmra.mxu0 %v175
    %v224 = vpop.f32.mrf.mxu0
    %v225 = vadd.f32 0.0, %v224
    %v226 = vpop.f32.mrf.mxu0
    %v227 = vadd.f32 0.0, %v226
    %228 = vmatmul.bf16.gmra.mxu0 %v178
    %v229 = vpop.f32.mrf.mxu0
    %v230 = vadd.f32 0.0, %v229
    %v231 = vpop.f32.mrf.mxu0
    %v232 = vadd.f32 0.0, %v231
    %233 = vmatmul.bf16.gmra.mxu0 %v181
    %v234 = vpop.f32.mrf.mxu0
    %v235 = vadd.f32 0.0, %v234
    %v236 = vpop.f32.mrf.mxu0
    %v237 = vadd.f32 0.0, %v236
    %238 = vmatmul.bf16.gmra.mxu0 %v184
    %v239 = vpop.f32.mrf.mxu0
    %v240 = vadd.f32 0.0, %v239
    %v241 = vpop.f32.mrf.mxu0
    %v242 = vadd.f32 0.0, %v241
    %243 = vdwg.mxu0
    %244 = vmatpush.bf16.msra.mxu0 0
    %245 = vmatpush.bf16.msra.mxu0 0
    %246 = vmatpush.bf16.msra.mxu0 0
    %247 = vmatpush.bf16.msra.mxu0 0
    %248 = vmatpush.bf16.msra.mxu0 0
    %249 = vmatpush.bf16.msra.mxu0 0
    %250 = vmatpush.bf16.msra.mxu0 %v100
    %251 = vmatpush.bf16.msra.mxu0 %v97
    %252 = vmatmul.bf16.gmra.mxu0 %v175
    %v253 = vpop.f32.mrf.mxu0
    %v254 = vadd.f32 0.0, %v253
    %v255 = vpop.f32.mrf.mxu0
    %v256 = vadd.f32 0.0, %v255
    %257 = vmatmul.bf16.gmra.mxu0 %v178
    %v258 = vpop.f32.mrf.mxu0
    %v259 = vadd.f32 0.0, %v258
    %v260 = vpop.f32.mrf.mxu0
    %v261 = vadd.f32 0.0, %v260
    %262 = vmatmul.bf16.gmra.mxu0 %v181
    %v263 = vpop.f32.mrf.mxu0
    %v264 = vadd.f32 0.0, %v263
    %v265 = vpop.f32.mrf.mxu0
    %v266 = vadd.f32 0.0, %v265
    %267 = vmatmul.bf16.gmra.mxu0 %v184
    %v268 = vpop.f32.mrf.mxu0
    %v269 = vadd.f32 0.0, %v268
    %v270 = vpop.f32.mrf.mxu0
    %v271 = vadd.f32 0.0, %v270
    %272 = vdwg.mxu0
    %v281 = vunpack.c.l.b16 %v101
    %v282 = vunpack.c.l.b16 %v102
    %v283 = vunpack.c.l.b16 %v103
    %v284 = vunpack.c.l.b16 %v104
    %v285 = vunpack.c.l.b16 %v105
    %v286 = vunpack.c.l.b16 %v106
    %v287 = vunpack.c.l.b16 %v107
    %v288 = vunpack.c.l.b16 %v108
    %v289 = vpack.c.b16 %v282, %v281
    %v290 = vpack.c.b16 %v284, %v283
    %v291 = vpack.c.b16 %v286, %v285
    %v292 = vpack.c.b16 %v288, %v287
    %v294 = vsel %vm173, %v289, 0
    %v297 = vsel %vm173, %v290, 0
    %v300 = vsel %vm173, %v291, 0
    %v303 = vsel %vm173, %v292, 0
    %305 = vmatpush.bf16.msra.mxu0 0
    %306 = vmatpush.bf16.msra.mxu0 0
    %307 = vmatpush.bf16.msra.mxu0 0
    %308 = vmatpush.bf16.msra.mxu0 0
    %309 = vmatpush.bf16.msra.mxu0 0
    %310 = vmatpush.bf16.msra.mxu0 0
    %311 = vmatpush.bf16.msra.mxu0 %v98
    %312 = vmatpush.bf16.msra.mxu0 %v95
    %313 = vmatmul.bf16.gmra.mxu0 %v294
    %v314 = vpop.f32.mrf.mxu0
    %v315 = vadd.f32 %v196, %v314
    %v316 = vpop.f32.mrf.mxu0
    %v317 = vadd.f32 %v198, %v316
    %318 = vmatmul.bf16.gmra.mxu0 %v297
    %v319 = vpop.f32.mrf.mxu0
    %v320 = vadd.f32 %v201, %v319
    %v321 = vpop.f32.mrf.mxu0
    %v322 = vadd.f32 %v203, %v321
    %323 = vmatmul.bf16.gmra.mxu0 %v300
    %v324 = vpop.f32.mrf.mxu0
    %v325 = vadd.f32 %v206, %v324
    %v326 = vpop.f32.mrf.mxu0
    %v327 = vadd.f32 %v208, %v326
    %328 = vmatmul.bf16.gmra.mxu0 %v303
    %v329 = vpop.f32.mrf.mxu0
    %v330 = vadd.f32 %v211, %v329
    %v331 = vpop.f32.mrf.mxu0
    %v332 = vadd.f32 %v213, %v331
    %333 = vdwg.mxu0
    %334 = vmatpush.bf16.msra.mxu0 0
    %335 = vmatpush.bf16.msra.mxu0 0
    %336 = vmatpush.bf16.msra.mxu0 0
    %337 = vmatpush.bf16.msra.mxu0 0
    %338 = vmatpush.bf16.msra.mxu0 0
    %339 = vmatpush.bf16.msra.mxu0 0
    %340 = vmatpush.bf16.msra.mxu0 %v99
    %341 = vmatpush.bf16.msra.mxu0 %v96
    %342 = vmatmul.bf16.gmra.mxu0 %v294
    %v343 = vpop.f32.mrf.mxu0
    %v344 = vadd.f32 %v225, %v343
    %v345 = vpop.f32.mrf.mxu0
    %v346 = vadd.f32 %v227, %v345
    %347 = vmatmul.bf16.gmra.mxu0 %v297
    %v348 = vpop.f32.mrf.mxu0
    %v349 = vadd.f32 %v230, %v348
    %v350 = vpop.f32.mrf.mxu0
    %v351 = vadd.f32 %v232, %v350
    %352 = vmatmul.bf16.gmra.mxu0 %v300
    %v353 = vpop.f32.mrf.mxu0
    %v354 = vadd.f32 %v235, %v353
    %v355 = vpop.f32.mrf.mxu0
    %v356 = vadd.f32 %v237, %v355
    %357 = vmatmul.bf16.gmra.mxu0 %v303
    %v358 = vpop.f32.mrf.mxu0
    %v359 = vadd.f32 %v240, %v358
    %v360 = vpop.f32.mrf.mxu0
    %v361 = vadd.f32 %v242, %v360
    %362 = vdwg.mxu0
    %363 = vmatpush.bf16.msra.mxu0 0
    %364 = vmatpush.bf16.msra.mxu0 0
    %365 = vmatpush.bf16.msra.mxu0 0
    %366 = vmatpush.bf16.msra.mxu0 0
    %367 = vmatpush.bf16.msra.mxu0 0
    %368 = vmatpush.bf16.msra.mxu0 0
    %369 = vmatpush.bf16.msra.mxu0 %v100
    %370 = vmatpush.bf16.msra.mxu0 %v97
    %371 = vmatmul.bf16.gmra.mxu0 %v294
    %v372 = vpop.f32.mrf.mxu0
    %v373 = vadd.f32 %v254, %v372
    %v374 = vpop.f32.mrf.mxu0
    %v375 = vadd.f32 %v256, %v374
    %376 = vmatmul.bf16.gmra.mxu0 %v297
    %v377 = vpop.f32.mrf.mxu0
    %v378 = vadd.f32 %v259, %v377
    %v379 = vpop.f32.mrf.mxu0
    %v380 = vadd.f32 %v261, %v379
    %381 = vmatmul.bf16.gmra.mxu0 %v300
    %v382 = vpop.f32.mrf.mxu0
    %v383 = vadd.f32 %v264, %v382
    %v384 = vpop.f32.mrf.mxu0
    %v385 = vadd.f32 %v266, %v384
    %386 = vmatmul.bf16.gmra.mxu0 %v303
    %v387 = vpop.f32.mrf.mxu0
    %v388 = vadd.f32 %v269, %v387
    %v389 = vpop.f32.mrf.mxu0
    %v390 = vadd.f32 %v271, %v389
    %391 = vdwg.mxu0
    %v393 = vsel %vm173, %v149, 0
    %v396 = vsel %vm173, %v150, 0
    %v399 = vsel %vm173, %v151, 0
    %v402 = vsel %vm173, %v152, 0
    %404 = vmatpush.bf16.msra.mxu0 0
    %405 = vmatpush.bf16.msra.mxu0 0
    %406 = vmatpush.bf16.msra.mxu0 0
    %407 = vmatpush.bf16.msra.mxu0 0
    %408 = vmatpush.bf16.msra.mxu0 0
    %409 = vmatpush.bf16.msra.mxu0 0
    %410 = vmatpush.bf16.msra.mxu0 %v98
    %411 = vmatpush.bf16.msra.mxu0 %v95
    %412 = vmatmul.bf16.gmra.mxu0 %v393
    %v413 = vpop.f32.mrf.mxu0
    %v414 = vadd.f32 0.0, %v413
    %v415 = vpop.f32.mrf.mxu0
    %v416 = vadd.f32 0.0, %v415
    %417 = vmatmul.bf16.gmra.mxu0 %v396
    %v418 = vpop.f32.mrf.mxu0
    %v419 = vadd.f32 0.0, %v418
    %v420 = vpop.f32.mrf.mxu0
    %v421 = vadd.f32 0.0, %v420
    %422 = vmatmul.bf16.gmra.mxu0 %v399
    %v423 = vpop.f32.mrf.mxu0
    %v424 = vadd.f32 0.0, %v423
    %v425 = vpop.f32.mrf.mxu0
    %v426 = vadd.f32 0.0, %v425
    %427 = vmatmul.bf16.gmra.mxu0 %v402
    %v428 = vpop.f32.mrf.mxu0
    %v429 = vadd.f32 0.0, %v428
    %v430 = vpop.f32.mrf.mxu0
    %v431 = vadd.f32 0.0, %v430
    %432 = vdwg.mxu0
    %433 = vmatpush.bf16.msra.mxu0 0
    %434 = vmatpush.bf16.msra.mxu0 0
    %435 = vmatpush.bf16.msra.mxu0 0
    %436 = vmatpush.bf16.msra.mxu0 0
    %437 = vmatpush.bf16.msra.mxu0 0
    %438 = vmatpush.bf16.msra.mxu0 0
    %439 = vmatpush.bf16.msra.mxu0 %v99
    %440 = vmatpush.bf16.msra.mxu0 %v96
    %441 = vmatmul.bf16.gmra.mxu0 %v393
    %v442 = vpop.f32.mrf.mxu0
    %v443 = vadd.f32 0.0, %v442
    %v444 = vpop.f32.mrf.mxu0
    %v445 = vadd.f32 0.0, %v444
    %446 = vmatmul.bf16.gmra.mxu0 %v396
    %v447 = vpop.f32.mrf.mxu0
    %v448 = vadd.f32 0.0, %v447
    %v449 = vpop.f32.mrf.mxu0
    %v450 = vadd.f32 0.0, %v449
    %451 = vmatmul.bf16.gmra.mxu0 %v399
    %v452 = vpop.f32.mrf.mxu0
    %v453 = vadd.f32 0.0, %v452
    %v454 = vpop.f32.mrf.mxu0
    %v455 = vadd.f32 0.0, %v454
    %456 = vmatmul.bf16.gmra.mxu0 %v402
    %v457 = vpop.f32.mrf.mxu0
    %v458 = vadd.f32 0.0, %v457
    %v459 = vpop.f32.mrf.mxu0
    %v460 = vadd.f32 0.0, %v459
    %461 = vdwg.mxu0
    %462 = vmatpush.bf16.msra.mxu0 0
    %463 = vmatpush.bf16.msra.mxu0 0
    %464 = vmatpush.bf16.msra.mxu0 0
    %465 = vmatpush.bf16.msra.mxu0 0
    %466 = vmatpush.bf16.msra.mxu0 0
    %467 = vmatpush.bf16.msra.mxu0 0
    %468 = vmatpush.bf16.msra.mxu0 %v100
    %469 = vmatpush.bf16.msra.mxu0 %v97
    %470 = vmatmul.bf16.gmra.mxu0 %v393
    %v471 = vpop.f32.mrf.mxu0
    %v472 = vadd.f32 0.0, %v471
    %v473 = vpop.f32.mrf.mxu0
    %v474 = vadd.f32 0.0, %v473
    %475 = vmatmul.bf16.gmra.mxu0 %v396
    %v476 = vpop.f32.mrf.mxu0
    %v477 = vadd.f32 0.0, %v476
    %v478 = vpop.f32.mrf.mxu0
    %v479 = vadd.f32 0.0, %v478
    %480 = vmatmul.bf16.gmra.mxu0 %v399
    %v481 = vpop.f32.mrf.mxu0
    %v482 = vadd.f32 0.0, %v481
    %v483 = vpop.f32.mrf.mxu0
    %v484 = vadd.f32 0.0, %v483
    %485 = vmatmul.bf16.gmra.mxu0 %v402
    %v486 = vpop.f32.mrf.mxu0
    %v487 = vadd.f32 0.0, %v486
    %v488 = vpop.f32.mrf.mxu0
    %v489 = vadd.f32 0.0, %v488
    %490 = vdwg.mxu0
    %v491 = vadd.f32 %v315, %v414
    %v492 = vadd.f32 %v344, %v443
    %v493 = vadd.f32 %v373, %v472
    %v494 = vadd.f32 %v317, %v416
    %v495 = vadd.f32 %v346, %v445
    %v496 = vadd.f32 %v375, %v474
    %v497 = vadd.f32 %v320, %v419
    %v498 = vadd.f32 %v349, %v448
    %v499 = vadd.f32 %v378, %v477
    %v500 = vadd.f32 %v322, %v421
    %v501 = vadd.f32 %v351, %v450
    %v502 = vadd.f32 %v380, %v479
    %v503 = vadd.f32 %v325, %v424
    %v504 = vadd.f32 %v354, %v453
    %v505 = vadd.f32 %v383, %v482
    %v506 = vadd.f32 %v327, %v426
    %v507 = vadd.f32 %v356, %v455
    %v508 = vadd.f32 %v385, %v484
    %v509 = vadd.f32 %v330, %v429
    %v510 = vadd.f32 %v359, %v458
    %v511 = vadd.f32 %v388, %v487
    %v512 = vadd.f32 %v332, %v431
    %v513 = vadd.f32 %v361, %v460
    %v514 = vadd.f32 %v390, %v489
    %vm515 = vcmp.lt.s32.totalorder %v24, 0
    %v516 = vsub.s32 0, %v24
    %v517 = vsel %vm515, %v516, %v24
    %v518 = vand.u32 %v517, 65535
    %v519 = vshrl.u32 %v517, 16
    %v521 = vmul.u32 %v518, 43691
    %v522 = vmul.u32 %v518, 43690
    %v523 = vmul.u32 %v519, 43691
    %v524 = vmul.u32 %v519, 43690
    %v525 = vshll.u32 %v522, 16
    %v526 = vshrl.u32 %v522, 16
    %v527 = vshll.u32 %v523, 16
    %v528 = vshrl.u32 %v523, 16
    %vm529 = vc.u32 %v521, %v525
    %v530 = vsel %vm529, 1, 0
    %v531 = vadd.s32 %v521, %v525
    %v532 = vadd.s32 %v524, %v530
    %vm533 = vc.u32 %v531, %v527
    %v534 = vsel %vm533, 1, 0
    %v535 = vadd.s32 %v531, %v527
    %v536 = vadd.s32 %v532, %v534
    %v537 = vadd.s32 %v536, %v526
    %v538 = vadd.s32 %v537, %v528
    %v539 = vshrl.u32 %v538, 3
    %v540 = vmul.u32 %v539, 12
    %v541 = vsub.s32 %v517, %v540
    %v542 = vsub.s32 0, %v541
    %v543 = vsel %vm515, %v542, %v541
    %vm544 = vcmp.lt.s32.totalorder %v25, 0
    %v545 = vsub.s32 0, %v25
    %v546 = vsel %vm544, %v545, %v25
    %v547 = vand.u32 %v546, 65535
    %v548 = vshrl.u32 %v546, 16
    %v550 = vmul.u32 %v547, 43691
    %v551 = vmul.u32 %v547, 43690
    %v552 = vmul.u32 %v548, 43691
    %v553 = vmul.u32 %v548, 43690
    %v554 = vshll.u32 %v551, 16
    %v555 = vshrl.u32 %v551, 16
    %v556 = vshll.u32 %v552, 16
    %v557 = vshrl.u32 %v552, 16
    %vm558 = vc.u32 %v550, %v554
    %v559 = vsel %vm558, 1, 0
    %v560 = vadd.s32 %v550, %v554
    %v561 = vadd.s32 %v553, %v559
    %vm562 = vc.u32 %v560, %v556
    %v563 = vsel %vm562, 1, 0
    %v564 = vadd.s32 %v560, %v556
    %v565 = vadd.s32 %v561, %v563
    %v566 = vadd.s32 %v565, %v555
    %v567 = vadd.s32 %v566, %v557
    %v568 = vshrl.u32 %v567, 3
    %v569 = vmul.u32 %v568, 12
    %v570 = vsub.s32 %v546, %v569
    %v571 = vsub.s32 0, %v570
    %v572 = vsel %vm544, %v571, %v570
    %vm573 = vcmp.lt.s32.totalorder %v26, 0
    %v574 = vsub.s32 0, %v26
    %v575 = vsel %vm573, %v574, %v26
    %v576 = vand.u32 %v575, 65535
    %v577 = vshrl.u32 %v575, 16
    %v579 = vmul.u32 %v576, 43691
    %v580 = vmul.u32 %v576, 43690
    %v581 = vmul.u32 %v577, 43691
    %v582 = vmul.u32 %v577, 43690
    %v583 = vshll.u32 %v580, 16
    %v584 = vshrl.u32 %v580, 16
    %v585 = vshll.u32 %v581, 16
    %v586 = vshrl.u32 %v581, 16
    %vm587 = vc.u32 %v579, %v583
    %v588 = vsel %vm587, 1, 0
    %v589 = vadd.s32 %v579, %v583
    %v590 = vadd.s32 %v582, %v588
    %vm591 = vc.u32 %v589, %v585
    %v592 = vsel %vm591, 1, 0
    %v593 = vadd.s32 %v589, %v585
    %v594 = vadd.s32 %v590, %v592
    %v595 = vadd.s32 %v594, %v584
    %v596 = vadd.s32 %v595, %v586
    %v597 = vshrl.u32 %v596, 3
    %v598 = vmul.u32 %v597, 12
    %v599 = vsub.s32 %v575, %v598
    %v600 = vsub.s32 0, %v599
    %v601 = vsel %vm573, %v600, %v599
    %vm602 = vcmp.ne.s32.totalorder %v543, 0
    %vm603 = vcmp.ne.s32.totalorder %v572, 0
    %vm604 = vcmp.ne.s32.totalorder %v601, 0
    %vm605 = vcmp.lt.s32.totalorder %v543, 0
    %vm606 = vcmp.lt.s32.totalorder %v572, 0
    %vm607 = vcmp.lt.s32.totalorder %v601, 0
    %vm608 = vmand %vm605, %vm602
    %vm609 = vmand %vm606, %vm603
    %vm610 = vmand %vm607, %vm604
    %v611 = vadd.s32 %v543, 12
    %v612 = vadd.s32 %v572, 12
    %v613 = vadd.s32 %v601, 12
    %v614 = vsel %vm608, %v611, %v543
    %v615 = vsel %vm609, %v612, %v572
    %v616 = vsel %vm610, %v613, %v601
    %v617 = vcvt.s32.f32 %v614
    %v618 = vcvt.s32.f32 %v615
    %v619 = vcvt.s32.f32 %v616
    %v620 = vmul.f32 %v617, 0.8
    %v621 = vmul.f32 %v618, 0.8
    %v622 = vmul.f32 %v619, 0.8
    %v623 = vadd.f32 %v620, -4.4
    %v624 = vadd.f32 %v621, -4.4
    %v625 = vadd.f32 %v622, -4.4
    %v626 = vsub.f32 %v491, %v623
    %v627 = vsub.f32 %v492, %v624
    %v628 = vsub.f32 %v493, %v625
    %v629 = vsub.f32 %v494, %v623
    %v630 = vsub.f32 %v495, %v624
    %v631 = vsub.f32 %v496, %v625
    %v632 = vsub.f32 %v497, %v623
    %v633 = vsub.f32 %v498, %v624
    %v634 = vsub.f32 %v499, %v625
    %v635 = vsub.f32 %v500, %v623
    %v636 = vsub.f32 %v501, %v624
    %v637 = vsub.f32 %v502, %v625
    %v638 = vsub.f32 %v503, %v623
    %v639 = vsub.f32 %v504, %v624
    %v640 = vsub.f32 %v505, %v625
    %v641 = vsub.f32 %v506, %v623
    %v642 = vsub.f32 %v507, %v624
    %v643 = vsub.f32 %v508, %v625
    %v644 = vsub.f32 %v509, %v623
    %v645 = vsub.f32 %v510, %v624
    %v646 = vsub.f32 %v511, %v625
    %v647 = vsub.f32 %v512, %v623
    %v648 = vsub.f32 %v513, %v624
    %v649 = vsub.f32 %v514, %v625
    %v650 = vmul.f32 %v626, %v626
    %v651 = vmul.f32 %v627, %v627
    %v652 = vmul.f32 %v628, %v628
    %v653 = vmul.f32 %v629, %v629
    %v654 = vmul.f32 %v630, %v630
    %v655 = vmul.f32 %v631, %v631
    %v656 = vmul.f32 %v632, %v632
    %v657 = vmul.f32 %v633, %v633
    %v658 = vmul.f32 %v634, %v634
    %v659 = vmul.f32 %v635, %v635
    %v660 = vmul.f32 %v636, %v636
    %v661 = vmul.f32 %v637, %v637
    %v662 = vmul.f32 %v638, %v638
    %v663 = vmul.f32 %v639, %v639
    %v664 = vmul.f32 %v640, %v640
    %v665 = vmul.f32 %v641, %v641
    %v666 = vmul.f32 %v642, %v642
    %v667 = vmul.f32 %v643, %v643
    %v668 = vmul.f32 %v644, %v644
    %v669 = vmul.f32 %v645, %v645
    %v670 = vmul.f32 %v646, %v646
    %v671 = vmul.f32 %v647, %v647
    %v672 = vmul.f32 %v648, %v648
    %v673 = vmul.f32 %v649, %v649
    %v674 = vmul.f32 %v650, -0.5
    %v675 = vmul.f32 %v651, -0.5
    %v676 = vmul.f32 %v652, -0.5
    %v677 = vmul.f32 %v653, -0.5
    %v678 = vmul.f32 %v654, -0.5
    %v679 = vmul.f32 %v655, -0.5
    %v680 = vmul.f32 %v656, -0.5
    %v681 = vmul.f32 %v657, -0.5
    %v682 = vmul.f32 %v658, -0.5
    %v683 = vmul.f32 %v659, -0.5
    %v684 = vmul.f32 %v660, -0.5
    %v685 = vmul.f32 %v661, -0.5
    %v686 = vmul.f32 %v662, -0.5
    %v687 = vmul.f32 %v663, -0.5
    %v688 = vmul.f32 %v664, -0.5
    %v689 = vmul.f32 %v665, -0.5
    %v690 = vmul.f32 %v666, -0.5
    %v691 = vmul.f32 %v667, -0.5
    %v692 = vmul.f32 %v668, -0.5
    %v693 = vmul.f32 %v669, -0.5
    %v694 = vmul.f32 %v670, -0.5
    %v695 = vmul.f32 %v671, -0.5
    %v696 = vmul.f32 %v672, -0.5
    %v697 = vmul.f32 %v673, -0.5
    %v698 = vmul.f32 %v674, 1.442695
    %v699 = vpow.pop %v698
    %v700 = vmul.f32 %v675, 1.442695
    %v701 = vpow.pop %v700
    %v702 = vmul.f32 %v676, 1.442695
    %v703 = vpow.pop %v702
    %v704 = vmul.f32 %v677, 1.442695
    %v705 = vpow.pop %v704
    %v706 = vmul.f32 %v678, 1.442695
    %v707 = vpow.pop %v706
    %v708 = vmul.f32 %v679, 1.442695
    %v709 = vpow.pop %v708
    %v710 = vmul.f32 %v680, 1.442695
    %v711 = vpow.pop %v710
    %v712 = vmul.f32 %v681, 1.442695
    %v713 = vpow.pop %v712
    %v714 = vmul.f32 %v682, 1.442695
    %v715 = vpow.pop %v714
    %v716 = vmul.f32 %v683, 1.442695
    %v717 = vpow.pop %v716
    %v718 = vmul.f32 %v684, 1.442695
    %v719 = vpow.pop %v718
    %v720 = vmul.f32 %v685, 1.442695
    %v721 = vpow.pop %v720
    %v722 = vmul.f32 %v686, 1.442695
    %v723 = vpow.pop %v722
    %v724 = vmul.f32 %v687, 1.442695
    %v725 = vpow.pop %v724
    %v726 = vmul.f32 %v688, 1.442695
    %v727 = vpow.pop %v726
    %v728 = vmul.f32 %v689, 1.442695
    %v729 = vpow.pop %v728
    %v730 = vmul.f32 %v690, 1.442695
    %v731 = vpow.pop %v730
    %v732 = vmul.f32 %v691, 1.442695
    %v733 = vpow.pop %v732
    %v734 = vmul.f32 %v692, 1.442695
    %v735 = vpow.pop %v734
    %v736 = vmul.f32 %v693, 1.442695
    %v737 = vpow.pop %v736
    %v738 = vmul.f32 %v694, 1.442695
    %v739 = vpow.pop %v738
    %v740 = vmul.f32 %v695, 1.442695
    %v741 = vpow.pop %v740
    %v742 = vmul.f32 %v696, 1.442695
    %v743 = vpow.pop %v742
    %v744 = vmul.f32 %v697, 1.442695
    %v745 = vpow.pop %v744
    %746 = vst [vmem:[#allocation2] sm:$0xff] %v699
    %747 = vst [vmem:[#allocation2 + $0x8] sm:$0xff] %v701
    %748 = vst [vmem:[#allocation2 + $0x10] sm:$0xff] %v703
    %749 = vst [vmem:[#allocation2 + $0x18] sm:$0xff] %v705
    %750 = vst [vmem:[#allocation2 + $0x20] sm:$0xff] %v707
    %751 = vst [vmem:[#allocation2 + $0x28] sm:$0xff] %v709
    %752 = vst [vmem:[#allocation2 + $0x30] sm:$0xff] %v711
    %753 = vst [vmem:[#allocation2 + $0x38] sm:$0xff] %v713
    %754 = vst [vmem:[#allocation2 + $0x40] sm:$0xff] %v715
    %755 = vst [vmem:[#allocation2 + $0x48] sm:$0xff] %v717
    %756 = vst [vmem:[#allocation2 + $0x50] sm:$0xff] %v719
    %757 = vst [vmem:[#allocation2 + $0x58] sm:$0xff] %v721
    %758 = vst [vmem:[#allocation2 + $0x60] sm:$0xff] %v723
    %759 = vst [vmem:[#allocation2 + $0x68] sm:$0xff] %v725
    %760 = vst [vmem:[#allocation2 + $0x70] sm:$0xff] %v727
    %761 = vst [vmem:[#allocation2 + $0x78] sm:$0xff] %v729
    %762 = vst [vmem:[#allocation2 + $0x80] sm:$0xff] %v731
    %763 = vst [vmem:[#allocation2 + $0x88] sm:$0xff] %v733
    %764 = vst [vmem:[#allocation2 + $0x90] sm:$0xff] %v735
    %765 = vst [vmem:[#allocation2 + $0x98] sm:$0xff] %v737
    %766 = vst [vmem:[#allocation2 + $0xa0] sm:$0xff] %v739
    %767 = vst [vmem:[#allocation2 + $0xa8] sm:$0xff] %v741
    %768 = vst [vmem:[#allocation2 + $0xb0] sm:$0xff] %v743
    %769 = vst [vmem:[#allocation2 + $0xb8] sm:$0xff] %v745
    // Predicated region
    $region6: #{tpu_custom_call.1} parent=1 // pred_check
      _
    $region7: #{tpu_custom_call.1} parent=1 // pred_check_branch
      %771 = sbr.rel (0) target = $region9
    $region8: #{tpu_custom_call.1} parent=1 // pred_region
      %773 = vsyncadd [#allocation3], 0
      %s774 = sshll.u32 [#allocation2], 4
      %s775 = int_to_ptr.vmem [resolvable:$true] %s774
      %s776 = sshll.u32 %s1, 4
      %s777 = int_to_ptr.hbm [resolvable:$true] %s776
      %782 = dma.vmem_to_hbm [thread:$0]  %s775, 3072, %s777, [#allocation3], 384, 384, 24
    $region9: #{tpu_custom_call.1} parent=1 // pred_fallthru
      _
    // Predicated region
    $region10: #{tpu_custom_call.1} parent=1 // pred_check
      _
    $region11: #{tpu_custom_call.1} parent=1 // pred_check_branch
      %784 = sbr.rel (0) target = $region13
    $region12: #{tpu_custom_call.1} parent=1 // pred_region
      %786 = dma.done [#allocation3], 3072
    $region13: #{tpu_custom_call.1} parent=1 // pred_fallthru
      _
    %787 = vsyncpa [#allocation3], 1

</llo_original>
